<compile_context>
chip_gen: v7x
topology: tpu7x:2x2x1
jax: 0.10.0
libtpu: 0.0.40
codegen_flags: <defaults>
</compile_context>

<pallas_src>
import math
from functools import partial

import jax
import jax.numpy as jnp
from jax import lax
from jax.experimental import pallas as pl
from jax.experimental.pallas import tpu as pltpu


# ----------------------------------------------------------------------------
# helpers
# ----------------------------------------------------------------------------

def _gelu(x):
    # TODO(synk): PyTorch nn.GELU is exact (erf); tanh-approx used here (diff < ~1e-3).
    c = math.sqrt(2.0 / math.pi)
    return 0.5 * x * (1.0 + jnp.tanh(c * (x + 0.044715 * x * x * x)))


# ----------------------------------------------------------------------------
# Pallas kernels
# ----------------------------------------------------------------------------

def _ln_kernel(x_ref, g_ref, b_ref, o_ref, *, eps):
    x = x_ref[...]
    mu = jnp.mean(x, axis=-1, keepdims=True)
    var = jnp.mean((x - mu) ** 2, axis=-1, keepdims=True)
    o_ref[...] = (x - mu) * lax.rsqrt(var + eps) * g_ref[...] + b_ref[...]


def pallas_layernorm(x2d, g, b, eps=1e-5):
    """LayerNorm over the last dim of a 2-D slab. g/b: (1, C)."""
    M, C = x2d.shape
    return pl.pallas_call(
        partial(_ln_kernel, eps=eps),
        out_shape=jax.ShapeDtypeStruct((M, C), jnp.float32),
        grid=(1,),
        in_specs=[pl.BlockSpec((M, C), lambda i: (0, 0)),
                  pl.BlockSpec((1, C), lambda i: (0, 0)),
                  pl.BlockSpec((1, C), lambda i: (0, 0))],
        out_specs=pl.BlockSpec((M, C), lambda i: (0, 0)),
    )(x2d, g, b)


def _dwconv_bn_kernel(xpad_ref, w_ref, scale_ref, shift_ref,
                      q_ref, k_ref, v_ref, *, H, W, K):
    # xpad: (1, H+K-1, W+K-1, C) -- LN1'd spatial tokens, zero padded (NHWC)
    # w:    (3, K, K, C) depthwise weights for q/k/v; scale/shift: (3, 1, 1, C) folded BN
    x = xpad_ref[0]
    w = w_ref[...]
    for idx, o_ref in enumerate((q_ref, k_ref, v_ref)):
        acc = None
        for dy in range(K):
            for dx in range(K):
                term = x[dy:dy + H, dx:dx + W, :] * w[idx, dy, dx][None, None, :]
                acc = term if acc is None else acc + term
        o_ref[0] = acc * scale_ref[idx] + shift_ref[idx]


def pallas_dwconv_bn(xpad, w, scale, shift, *, H, W, K=3):
    """Depthwise KxK conv (stride 1) + folded BatchNorm for q/k/v, grid over batch."""
    B, Hp, Wp, C = xpad.shape
    out_sds = jax.ShapeDtypeStruct((B, H, W, C), jnp.float32)
    out_spec = pl.BlockSpec((1, H, W, C), lambda b: (b, 0, 0, 0))
    return pl.pallas_call(
        partial(_dwconv_bn_kernel, H=H, W=W, K=K),
        out_shape=(out_sds, out_sds, out_sds),
        grid=(B,),
        in_specs=[pl.BlockSpec((1, Hp, Wp, C), lambda b: (b, 0, 0, 0)),
                  pl.BlockSpec((3, K, K, C), lambda b: (0, 0, 0, 0)),
                  pl.BlockSpec((3, 1, 1, C), lambda b: (0, 0, 0, 0)),
                  pl.BlockSpec((3, 1, 1, C), lambda b: (0, 0, 0, 0))],
        out_specs=(out_spec, out_spec, out_spec),
        compiler_params=pltpu.CompilerParams(dimension_semantics=("parallel",)),
    )(xpad, w, scale, shift)


def _block_core_kernel(res_ref, qin_ref, kin_ref, vin_ref,
                       wqkv_ref, bqkv_ref, wo_ref, bo_ref,
                       ln2g_ref, ln2b_ref, w1_ref, b1_ref, w2_ref, b2_ref,
                       o_ref, *, nhead, scale, eps):
    """Fused: q/k/v Linear -> MHA -> out proj -> +res -> LN2 -> MLP(GELU) -> +res."""
    res = res_ref[0]                       # (T, C)   original block input (residual)
    T, C = res.shape
    hd = C // nhead

    # q/k/v linear projections (weights pre-transposed to (in, out))
    q = jnp.dot(qin_ref[0], wqkv_ref[0], preferred_element_type=jnp.float32) + bqkv_ref[0]
    k = jnp.dot(kin_ref[0], wqkv_ref[1], preferred_element_type=jnp.float32) + bqkv_ref[1]
    v = jnp.dot(vin_ref[0], wqkv_ref[2], preferred_element_type=jnp.float32) + bqkv_ref[2]

    # multi-head attention, all heads in this grid step; no k.T materialization
    heads = []
    for h in range(nhead):
        sl = slice(h * hd, (h + 1) * hd)
        qh, kh, vh = q[:, sl], k[:, sl], v[:, sl]
        s = lax.dot_general(qh, kh, (((1,), (1,)), ((), ())),
                            preferred_element_type=jnp.float32) * scale      # (T, T)
        s = s - jnp.max(s, axis=-1, keepdims=True)
        p = jnp.exp(s)
        p = p * pl.reciprocal(jnp.sum(p, axis=-1, keepdims=True), approx=True)
        heads.append(jnp.dot(p, vh, preferred_element_type=jnp.float32))     # (T, hd)
    ctx = jnp.concatenate(heads, axis=-1)                                    # (T, C)

    # output projection + residual, then LN2 + MLP + residual (all in VMEM/vregs)
    attn_out = jnp.dot(ctx, wo_ref[...], preferred_element_type=jnp.float32) + bo_ref[...]
    x1 = res + attn_out

    mu = jnp.mean(x1, axis=-1, keepdims=True)
    var = jnp.mean((x1 - mu) ** 2, axis=-1, keepdims=True)
    y = (x1 - mu) * lax.rsqrt(var + eps) * ln2g_ref[...] + ln2b_ref[...]

    hid = jnp.dot(y, w1_ref[...], preferred_element_type=jnp.float32) + b1_ref[...]
    hid = _gelu(hid)
    m = jnp.dot(hid, w2_ref[...], preferred_element_type=jnp.float32) + b2_ref[...]

    o_ref[0] = x1 + m


def pallas_block_core(x, q_in, k_in, v_in, p, *, nhead):
    B, T, C = x.shape
    Ch = p["w1"].shape[1]
    scale = float(C) ** -0.5               # CvT: dim_out ** -0.5 (NOT per-head)

    flops = int(B * (3 * 2 * T * C * C          # q/k/v linear projections
                     + 2 * 2 * T * T * C        # scores + context (summed over heads)
                     + 2 * T * C * C            # output projection
                     + 2 * 2 * T * C * Ch))     # MLP fc1 + fc2
    transc = int(B * (nhead * T * T + T * Ch))
    bytes_acc = int(4 * (5 * B * T * C + 4 * C * C + 2 * C * Ch + 3 * C + Ch + 6 * C))

    tok = pl.BlockSpec((1, T, C), lambda b: (b, 0, 0))

    def full(shape):
        return pl.BlockSpec(shape, lambda b, _s=shape: (0,) * len(_s))

    return pl.pallas_call(
        partial(_block_core_kernel, nhead=nhead, scale=scale, eps=1e-5),
        out_shape=jax.ShapeDtypeStruct((B, T, C), jnp.float32),
        grid=(B,),
        in_specs=[tok, tok, tok, tok,
                  full((3, C, C)), full((3, 1, C)),
                  full((C, C)), full((1, C)),
                  full((1, C)), full((1, C)),
                  full((C, Ch)), full((1, Ch)),
                  full((Ch, C)), full((1, C))],
        out_specs=tok,
        compiler_params=pltpu.CompilerParams(dimension_semantics=("parallel",)),
        cost_estimate=pl.CostEstimate(flops=flops, transcendentals=transc,
                                      bytes_accessed=bytes_acc),
    )(x, q_in, k_in, v_in,
      p["wqkv"], p["bqkv"], p["wo"], p["bo"],
      p["ln2_g"], p["ln2_b"], p["w1"], p["b1"], p["w2"], p["b2"])


def _ln_head_kernel(x_ref, g_ref, b_ref, w_ref, hb_ref, o_ref, *, eps):
    x = x_ref[...]
    mu = jnp.mean(x, axis=-1, keepdims=True)
    var = jnp.mean((x - mu) ** 2, axis=-1, keepdims=True)
    y = (x - mu) * lax.rsqrt(var + eps) * g_ref[...] + b_ref[...]
    o_ref[...] = jnp.dot(y, w_ref[...], preferred_element_type=jnp.float32) + hb_ref[...]


def pallas_ln_head(x, g, b, w, hb, eps=1e-5):
    """Fused final LayerNorm + classifier Linear on the cls token."""
    B, E = x.shape
    NC = w.shape[1]
    return pl.pallas_call(
        partial(_ln_head_kernel, eps=eps),
        out_shape=jax.ShapeDtypeStruct((B, NC), jnp.float32),
        grid=(1,),
        in_specs=[pl.BlockSpec((B, E), lambda i: (0, 0)),
                  pl.BlockSpec((1, E), lambda i: (0, 0)),
                  pl.BlockSpec((1, E), lambda i: (0, 0)),
                  pl.BlockSpec((E, NC), lambda i: (0, 0)),
                  pl.BlockSpec((1, NC), lambda i: (0, 0))],
        out_specs=pl.BlockSpec((B, NC), lambda i: (0, 0)),
    )(x, g, b, w, hb)


# ----------------------------------------------------------------------------
# CvT forward (Pallas path)
# ----------------------------------------------------------------------------

def cvt_block_forward(p, x, H, W, nhead):
    """One CvT Block: x -> x + Attn(LN1(x)) -> (+) MLP(LN2(.))."""
    B, T, C = x.shape
    xn = pallas_layernorm(x.reshape(B * T, C), p["ln1_g"], p["ln1_b"]).reshape(B, T, C)
    cls_n = xn[:, :1]                                     # cls token (LN'd) bypasses the conv
    sp = xn[:, 1:].reshape(B, H, W, C)
    sp_pad = jnp.pad(sp, ((0, 0), (1, 1), (1, 1), (0, 0)))
    q_sp, k_sp, v_sp = pallas_dwconv_bn(sp_pad, p["dw_w"], p["bn_scale"], p["bn_shift"],
                                        H=H, W=W, K=3)
    q_in = jnp.concatenate([cls_n, q_sp.reshape(B, H * W, C)], axis=1)
    k_in = jnp.concatenate([cls_n, k_sp.reshape(B, H * W, C)], axis=1)
    v_in = jnp.concatenate([cls_n, v_sp.reshape(B, H * W, C)], axis=1)
    return pallas_block_core(x, q_in, k_in, v_in, p, nhead=nhead)


def cvt_forward(params, x, *, patch_stride=2, patch_pad=1, nhead=4):
    # TODO(synk): patch-embedding Conv2d runs as a plain XLA conv (not a Pallas kernel);
    # everything downstream (LN, dw-conv+BN, attention, MLP, head) is Pallas.
    feat = lax.conv_general_dilated(
        x, params["patch_w"], window_strides=(patch_stride, patch_stride),
        padding=[(patch_pad, patch_pad), (patch_pad, patch_pad)],
        dimension_numbers=("NCHW", "OIHW", "NCHW"))
    feat = feat + params["patch_b"][None, :, None, None]
    B, E, H, W = feat.shape
    tokens = feat.reshape(B, E, H * W).transpose(0, 2, 1)             # b c h w -> b (h w) c
    tokens = pallas_layernorm(tokens.reshape(B * H * W, E),
                              params["pe_ln_g"], params["pe_ln_b"]).reshape(B, H * W, E)
    cls = jnp.broadcast_to(params["cls_token"], (B, 1, E))
    xt = jnp.concatenate([cls, tokens], axis=1)                       # (B, 1+HW, E)
    for blk in params["blocks"]:
        xt = cvt_block_forward(blk, xt, H, W, nhead)
    cls_out = xt[:, 0]                                                # (B, E)
    return pallas_ln_head(cls_out, params["norm_g"], params["norm_b"],
                          params["head_w"], params["head_b"])


# ----------------------------------------------------------------------------
# Pure-JAX reference (for correctness check)
# ----------------------------------------------------------------------------

def _ref_ln(x, g, b, eps=1e-5):
    mu = x.mean(-1, keepdims=True)
    var = ((x - mu) ** 2).mean(-1, keepdims=True)
    return (x - mu) / jnp.sqrt(var + eps) * g + b


def _ref_dwconv(x_sp, w):
    B, H, W, C = x_sp.shape
    K = w.shape[0]
    pad = (K - 1) // 2
    xp = jnp.pad(x_sp, ((0, 0), (pad, pad), (pad, pad), (0, 0)))
    acc = jnp.zeros_like(x_sp)
    for dy in range(K):
        for dx in range(K):
            acc = acc + xp[:, dy:dy + H, dx:dx + W, :] * w[dy, dx]
    return acc


def _ref_block(p, x, H, W, nhead):
    B, T, C = x.shape
    hd = C // nhead
    xn = _ref_ln(x, p["ln1_g"], p["ln1_b"])
    cls = xn[:, :1]
    sp = xn[:, 1:].reshape(B, H, W, C)
    qkv_in = []
    for i in range(3):
        conv = _ref_dwconv(sp, p["dw_w"][i]) * p["bn_scale"][i] + p["bn_shift"][i]
        qkv_in.append(jnp.concatenate([cls, conv.reshape(B, H * W, C)], axis=1))
    q = qkv_in[0] @ p["wqkv"][0] + p["bqkv"][0]
    k = qkv_in[1] @ p["wqkv"][1] + p["bqkv"][1]
    v = qkv_in[2] @ p["wqkv"][2] + p["bqkv"][2]
    q = q.reshape(B, T, nhead, hd).transpose(0, 2, 1, 3)
    k = k.reshape(B, T, nhead, hd).transpose(0, 2, 1, 3)
    v = v.reshape(B, T, nhead, hd).transpose(0, 2, 1, 3)
    s = jnp.einsum("bhld,bhtd->bhlt", q, k) * (float(C) ** -0.5)
    a = jax.nn.softmax(s, axis=-1)
    ctx = jnp.einsum("bhlt,bhtd->bhld", a, v).transpose(0, 2, 1, 3).reshape(B, T, C)
    x1 = x + ctx @ p["wo"] + p["bo"]
    y = _ref_ln(x1, p["ln2_g"], p["ln2_b"])
    hid = _gelu(y @ p["w1"] + p["b1"])
    return x1 + hid @ p["w2"] + p["b2"]


def _ref_forward(params, x, *, patch_stride=2, patch_pad=1, nhead=4):
    feat = lax.conv_general_dilated(
        x, params["patch_w"], window_strides=(patch_stride, patch_stride),
        padding=[(patch_pad, patch_pad), (patch_pad, patch_pad)],
        dimension_numbers=("NCHW", "OIHW", "NCHW"))
    feat = feat + params["patch_b"][None, :, None, None]
    B, E, H, W = feat.shape
    tokens = feat.reshape(B, E, H * W).transpose(0, 2, 1)
    tokens = _ref_ln(tokens, params["pe_ln_g"], params["pe_ln_b"])
    cls = jnp.broadcast_to(params["cls_token"], (B, 1, E))
    xt = jnp.concatenate([cls, tokens], axis=1)
    for blk in params["blocks"]:
        xt = _ref_block(blk, xt, H, W, nhead)
    y = _ref_ln(xt[:, 0], params["norm_g"], params["norm_b"])
    return y @ params["head_w"] + params["head_b"]


# ----------------------------------------------------------------------------
# Parameters (stored in TPU-friendly, pre-transposed (in, out) layout once)
# ----------------------------------------------------------------------------

def make_params(key, *, in_chans=3, E=32, depth=2, nhead=4, mlp_ratio=4,
                patch=3, num_classes=10):
    del nhead
    Ch = E * mlp_ratio
    keys = iter(jax.random.split(key, 64))
    f32 = jnp.float32

    def nrm(shape, s=0.05):
        return (s * jax.random.normal(next(keys), shape)).astype(f32)

    params = {
        "patch_w": nrm((E, in_chans, patch, patch), 0.1),   # OIHW (PyTorch conv layout)
        "patch_b": nrm((E,)),
        "pe_ln_g": 1.0 + nrm((1, E), 0.1), "pe_ln_b": nrm((1, E)),
        "cls_token": nrm((1, 1, E), 0.02),
        "norm_g": 1.0 + nrm((1, E), 0.1), "norm_b": nrm((1, E)),
        "head_w": nrm((E, num_classes)),                    # pre-transposed (in, out)
        "head_b": nrm((1, num_classes)),
        "blocks": [],
    }
    for _ in range(depth):
        # BatchNorm2d (eval mode) folded into per-channel scale/shift.
        # TODO(synk): training-mode BN (batch statistics) and stochastic Dropout/DropPath
        # are not implemented; eval semantics are used.
        bn_g = 1.0 + nrm((3, E), 0.1)
        bn_b = nrm((3, E))
        bn_mean = nrm((3, E), 0.1)
        bn_var = 0.5 + jnp.abs(nrm((3, E), 0.3))
        scale = bn_g / jnp.sqrt(bn_var + 1e-5)
        shift = bn_b - bn_mean * scale
        params["blocks"].append({
            "ln1_g": 1.0 + nrm((1, E), 0.1), "ln1_b": nrm((1, E)),
            "dw_w": nrm((3, 3, 3, E), 0.1),                 # (q/k/v, kh, kw, C)
            "bn_scale": scale.reshape(3, 1, 1, E),
            "bn_shift": shift.reshape(3, 1, 1, E),
            "wqkv": nrm((3, E, E)),                         # pre-transposed (in, out)
            "bqkv": nrm((3, 1, E)),
            "wo": nrm((E, E)), "bo": nrm((1, E)),
            "ln2_g": 1.0 + nrm((1, E), 0.1), "ln2_b": nrm((1, E)),
            "w1": nrm((E, Ch)), "b1": nrm((1, Ch)),
            "w2": nrm((Ch, E)), "b2": nrm((1, E)),
        })
    return params


# ----------------------------------------------------------------------------
# Main
# ----------------------------------------------------------------------------

if __name__ == "__main__":
    B, in_chans, img = 2, 3, 16
    E, depth, nhead, mlp_ratio = 32, 2, 4, 4
    patch, stride, pad, num_classes = 3, 2, 1, 10

    key = jax.random.PRNGKey(0)
    kp, kx = jax.random.split(key)
    params = make_params(kp, in_chans=in_chans, E=E, depth=depth, nhead=nhead,
                         mlp_ratio=mlp_ratio, patch=patch, num_classes=num_classes)
    x = jax.random.normal(kx, (B, in_chans, img, img), dtype=jnp.float32)

    logits = cvt_forward(params, x, patch_stride=stride, patch_pad=pad, nhead=nhead)
    logits = jax.block_until_ready(logits)

    ref = _ref_forward(params, x, patch_stride=stride, patch_pad=pad, nhead=nhead)
    assert logits.shape == (B, num_classes)
    max_diff = float(jnp.max(jnp.abs(logits - ref)))
    # tolerance covers the approx (EUP) reciprocal used in the in-kernel softmax
    assert jnp.allclose(logits, ref, atol=2e-2, rtol=2e-2), f"mismatch, max|diff|={max_diff}"

    print("KERNEL_OK")
</pallas_src>

<mosaic_0001>
module attributes {stable_mosaic.version = 11 : i64} {
  func.func @_ln_kernel(%arg0: i32, %arg1: memref<128x32xf32, #tpu.memory_space<vmem>>, %arg2: memref<1x32xf32, #tpu.memory_space<vmem>>, %arg3: memref<1x32xf32, #tpu.memory_space<vmem>>, %arg4: memref<128x32xf32, #tpu.memory_space<vmem>>) attributes {dimension_semantics = [#tpu.dimension_semantics<arbitrary>], iteration_bounds = array<i64: 1>, scalar_prefetch = 0 : i64, scratch_operands = 0 : i64, tpu.core_type = #tpu.core_type<tc>, window_params = [{pipeline_mode = #tpu.pipeline_mode<synchronous>, transform_indices = @transform_0, window_bounds = array<i64: 128, 32>}, {pipeline_mode = #tpu.pipeline_mode<synchronous>, transform_indices = @transform_1, window_bounds = array<i64: 1, 32>}, {pipeline_mode = #tpu.pipeline_mode<synchronous>, transform_indices = @transform_2, window_bounds = array<i64: 1, 32>}, {pipeline_mode = #tpu.pipeline_mode<synchronous>, transform_indices = @transform_3, window_bounds = array<i64: 128, 32>}]} {
    %c0 = arith.constant 0 : index
    %c0_0 = arith.constant 0 : index
    %0 = vector.load %arg1[%c0, %c0_0] : memref<128x32xf32, #tpu.memory_space<vmem>>, vector<128x32xf32>
    %cst = arith.constant dense<0.000000e+00> : vector<128xf32>
    %1 = vector.multi_reduction <add>, %0, %cst [1] : vector<128x32xf32> to vector<128xf32>
    %2 = vector.shape_cast %1 : vector<128xf32> to vector<128x1xf32>
    %cst_1 = arith.constant 3.200000e+01 : f32
    %3 = vector.broadcast %cst_1 : f32 to vector<128x1xf32>
    %4 = arith.divf %2, %3 : vector<128x1xf32>
    %5 = vector.broadcast %4 : vector<128x1xf32> to vector<128x32xf32>
    %6 = arith.subf %0, %5 : vector<128x32xf32>
    %7 = arith.mulf %6, %6 : vector<128x32xf32>
    %cst_2 = arith.constant dense<0.000000e+00> : vector<128xf32>
    %8 = vector.multi_reduction <add>, %7, %cst_2 [1] : vector<128x32xf32> to vector<128xf32>
    %9 = vector.shape_cast %8 : vector<128xf32> to vector<128x1xf32>
    %cst_3 = arith.constant 3.200000e+01 : f32
    %10 = vector.broadcast %cst_3 : f32 to vector<128x1xf32>
    %11 = arith.divf %9, %10 : vector<128x1xf32>
    %12 = vector.broadcast %4 : vector<128x1xf32> to vector<128x32xf32>
    %13 = arith.subf %0, %12 : vector<128x32xf32>
    %cst_4 = arith.constant 9.99999974E-6 : f32
    %14 = vector.broadcast %cst_4 : f32 to vector<128x1xf32>
    %15 = arith.addf %11, %14 : vector<128x1xf32>
    %16 = math.rsqrt %15 : vector<128x1xf32>
    %17 = vector.broadcast %16 : vector<128x1xf32> to vector<128x32xf32>
    %18 = arith.mulf %13, %17 : vector<128x32xf32>
    %c0_5 = arith.constant 0 : index
    %c0_6 = arith.constant 0 : index
    %19 = vector.load %arg2[%c0_5, %c0_6] : memref<1x32xf32, #tpu.memory_space<vmem>>, vector<1x32xf32>
    %20 = vector.broadcast %19 : vector<1x32xf32> to vector<128x32xf32>
    %21 = arith.mulf %18, %20 : vector<128x32xf32>
    %c0_7 = arith.constant 0 : index
    %c0_8 = arith.constant 0 : index
    %22 = vector.load %arg3[%c0_7, %c0_8] : memref<1x32xf32, #tpu.memory_space<vmem>>, vector<1x32xf32>
    %23 = vector.broadcast %22 : vector<1x32xf32> to vector<128x32xf32>
    %24 = arith.addf %21, %23 : vector<128x32xf32>
    %c0_9 = arith.constant 0 : index
    %c0_10 = arith.constant 0 : index
    %25 = vector.load %arg4[%c0_9, %c0_10] : memref<128x32xf32, #tpu.memory_space<vmem>>, vector<128x32xf32>
    tpu.vector_store %arg4[%c0_9, %c0_10], %24 {strides = array<i32>} : memref<128x32xf32, #tpu.memory_space<vmem>>, vector<128x32xf32>,
    return
  }
  func.func @transform_0(%arg0: i32) -> (i32, i32) {
    %c0_i32 = arith.constant 0 : i32
    %c0_i32_0 = arith.constant 0 : i32
    %c0_i32_1 = arith.constant 0 : i32
    return %c0_i32, %c0_i32_0 : i32, i32
  }
  func.func @transform_1(%arg0: i32) -> (i32, i32) {
    %c0_i32 = arith.constant 0 : i32
    %c0_i32_0 = arith.constant 0 : i32
    %c0_i32_1 = arith.constant 0 : i32
    return %c0_i32, %c0_i32_0 : i32, i32
  }
  func.func @transform_2(%arg0: i32) -> (i32, i32) {
    %c0_i32 = arith.constant 0 : i32
    %c0_i32_0 = arith.constant 0 : i32
    %c0_i32_1 = arith.constant 0 : i32
    return %c0_i32, %c0_i32_0 : i32, i32
  }
  func.func @transform_3(%arg0: i32) -> (i32, i32) {
    %c0_i32 = arith.constant 0 : i32
    %c0_i32_0 = arith.constant 0 : i32
    %c0_i32_1 = arith.constant 0 : i32
    return %c0_i32, %c0_i32_0 : i32, i32
  }
}

</mosaic_0001>

<llo_original>
// kernel: tpu_custom_call.1
$region0: #{tpu_custom_call.1}
  #allocation0 [shape = 'u32[]', space=smem, size = 0x4, offset = 0x4, fixed_abs, tag = 'smem constant byte address 0x4 - core index']
  #allocation1 [shape = 'u32[144,128]{1,0:T(1,128)}', space=vmem, size = 0x12000, scoped, tag = 'internal scratch']
  %s0 = inlined_call_operand.vmem [shape: f32[128,32], index: 0, kind: input, shape index: {}]
  %s1 = inlined_call_operand.vmem [shape: f32[1,32], index: 1, kind: input, shape index: {}]
  %s2 = inlined_call_operand.vmem [shape: f32[1,32], index: 2, kind: input, shape index: {}]
  %s3 = inlined_call_operand.vmem [shape: f32[128,32], index: 3, kind: output, shape index: {}]
  %s4 = sld [smem:[#allocation0]]
  $region22: #{tpu_custom_call.1} parent=0
    _
  %s6 = ssub.s32 1, %s4
  %s7 = scalar_select 0, %s6, %s4
  // Predicated region
  $region2: #{tpu_custom_call.1} parent=0 // pred_check
    _
  $region3: #{tpu_custom_call.1} parent=0 // pred_check_branch
    %9 = sbr.rel (0) target = $region5
  $region4: #{tpu_custom_call.1} parent=0 // pred_region
    _
  $region5: #{tpu_custom_call.1} parent=0 // pred_fallthru
    _
  // Predicated region
  $region6: #{tpu_custom_call.1} parent=0 // pred_check
    _
  $region7: #{tpu_custom_call.1} parent=0 // pred_check_branch
    %11 = sbr.rel (0) target = $region9
  $region8: #{tpu_custom_call.1} parent=0 // pred_region
    _
  $region9: #{tpu_custom_call.1} parent=0 // pred_fallthru
    _
  // Predicated region
  $region10: #{tpu_custom_call.1} parent=0 // pred_check
    _
  $region11: #{tpu_custom_call.1} parent=0 // pred_check_branch
    %13 = sbr.rel (0) target = $region13
  $region12: #{tpu_custom_call.1} parent=0 // pred_region
    _
  $region13: #{tpu_custom_call.1} parent=0 // pred_fallthru
    _
  %v14 = vld [vmem:[%s0] sm:$0xff]
  %v15 = vld [vmem:[%s0 + $0x8] sm:$0xff]
  %v16 = vld [vmem:[%s0 + $0x10] sm:$0xff]
  %v17 = vld [vmem:[%s0 + $0x18] sm:$0xff]
  %v18 = vld [vmem:[%s0 + $0x20] sm:$0xff]
  %v19 = vld [vmem:[%s0 + $0x28] sm:$0xff]
  %v20 = vld [vmem:[%s0 + $0x30] sm:$0xff]
  %v21 = vld [vmem:[%s0 + $0x38] sm:$0xff]
  %v22 = vld [vmem:[%s0 + $0x40] sm:$0xff]
  %v23 = vld [vmem:[%s0 + $0x48] sm:$0xff]
  %v24 = vld [vmem:[%s0 + $0x50] sm:$0xff]
  %v25 = vld [vmem:[%s0 + $0x58] sm:$0xff]
  %v26 = vld [vmem:[%s0 + $0x60] sm:$0xff]
  %v27 = vld [vmem:[%s0 + $0x68] sm:$0xff]
  %v28 = vld [vmem:[%s0 + $0x70] sm:$0xff]
  %v29 = vld [vmem:[%s0 + $0x78] sm:$0xff]
  %vm30 = vcmask 261120
  %v31 = vsel %vm30, %v14, 0.0
  %32 = vadd.xlane.f32.xlu0 %v31
  %v33 = vpop.xlane.xlu0 %32
  %v34 = vsel %vm30, %v15, 0.0
  %35 = vadd.xlane.f32.xlu0 %v34
  %v36 = vpop.xlane.xlu0 %35
  %v37 = vsel %vm30, %v16, 0.0
  %38 = vadd.xlane.f32.xlu0 %v37
  %v39 = vpop.xlane.xlu0 %38
  %v40 = vsel %vm30, %v17, 0.0
  %41 = vadd.xlane.f32.xlu0 %v40
  %v42 = vpop.xlane.xlu0 %41
  %v43 = vsel %vm30, %v18, 0.0
  %44 = vadd.xlane.f32.xlu0 %v43
  %v45 = vpop.xlane.xlu0 %44
  %v46 = vsel %vm30, %v19, 0.0
  %47 = vadd.xlane.f32.xlu0 %v46
  %v48 = vpop.xlane.xlu0 %47
  %v49 = vsel %vm30, %v20, 0.0
  %50 = vadd.xlane.f32.xlu0 %v49
  %v51 = vpop.xlane.xlu0 %50
  %v52 = vsel %vm30, %v21, 0.0
  %53 = vadd.xlane.f32.xlu0 %v52
  %v54 = vpop.xlane.xlu0 %53
  %v55 = vsel %vm30, %v22, 0.0
  %56 = vadd.xlane.f32.xlu0 %v55
  %v57 = vpop.xlane.xlu0 %56
  %v58 = vsel %vm30, %v23, 0.0
  %59 = vadd.xlane.f32.xlu0 %v58
  %v60 = vpop.xlane.xlu0 %59
  %v61 = vsel %vm30, %v24, 0.0
  %62 = vadd.xlane.f32.xlu0 %v61
  %v63 = vpop.xlane.xlu0 %62
  %v64 = vsel %vm30, %v25, 0.0
  %65 = vadd.xlane.f32.xlu0 %v64
  %v66 = vpop.xlane.xlu0 %65
  %v67 = vsel %vm30, %v26, 0.0
  %68 = vadd.xlane.f32.xlu0 %v67
  %v69 = vpop.xlane.xlu0 %68
  %v70 = vsel %vm30, %v27, 0.0
  %71 = vadd.xlane.f32.xlu0 %v70
  %v72 = vpop.xlane.xlu0 %71
  %v73 = vsel %vm30, %v28, 0.0
  %74 = vadd.xlane.f32.xlu0 %v73
  %v75 = vpop.xlane.xlu0 %74
  %v76 = vsel %vm30, %v29, 0.0
  %77 = vadd.xlane.f32.xlu0 %v76
  %v78 = vpop.xlane.xlu0 %77
  %v79 = vrcp.pop 32.0
  %v80 = vmul.f32 %v33, %v79
  %v81 = vmul.f32 %v36, %v79
  %v82 = vmul.f32 %v39, %v79
  %v83 = vmul.f32 %v42, %v79
  %v84 = vmul.f32 %v45, %v79
  %v85 = vmul.f32 %v48, %v79
  %v86 = vmul.f32 %v51, %v79
  %v87 = vmul.f32 %v54, %v79
  %v88 = vmul.f32 %v57, %v79
  %v89 = vmul.f32 %v60, %v79
  %v90 = vmul.f32 %v63, %v79
  %v91 = vmul.f32 %v66, %v79
  %v92 = vmul.f32 %v69, %v79
  %v93 = vmul.f32 %v72, %v79
  %v94 = vmul.f32 %v75, %v79
  %v95 = vmul.f32 %v78, %v79
  %v96 = vsub.f32 %v14, %v80
  %v97 = vsub.f32 %v15, %v81
  %v98 = vsub.f32 %v16, %v82
  %v99 = vsub.f32 %v17, %v83
  %v100 = vsub.f32 %v18, %v84
  %v101 = vsub.f32 %v19, %v85
  %v102 = vsub.f32 %v20, %v86
  %v103 = vsub.f32 %v21, %v87
  %v104 = vsub.f32 %v22, %v88
  %v105 = vsub.f32 %v23, %v89
  %v106 = vsub.f32 %v24, %v90
  %v107 = vsub.f32 %v25, %v91
  %v108 = vsub.f32 %v26, %v92
  %v109 = vsub.f32 %v27, %v93
  %v110 = vsub.f32 %v28, %v94
  %v111 = vsub.f32 %v29, %v95
  %v112 = vmul.f32 %v96, %v96
  %v113 = vmul.f32 %v97, %v97
  %v114 = vmul.f32 %v98, %v98
  %v115 = vmul.f32 %v99, %v99
  %v116 = vmul.f32 %v100, %v100
  %v117 = vmul.f32 %v101, %v101
  %v118 = vmul.f32 %v102, %v102
  %v119 = vmul.f32 %v103, %v103
  %v120 = vmul.f32 %v104, %v104
  %v121 = vmul.f32 %v105, %v105
  %v122 = vmul.f32 %v106, %v106
  %v123 = vmul.f32 %v107, %v107
  %v124 = vmul.f32 %v108, %v108
  %v125 = vmul.f32 %v109, %v109
  %v126 = vmul.f32 %v110, %v110
  %v127 = vmul.f32 %v111, %v111
  %v128 = vsel %vm30, %v112, 0.0
  %129 = vadd.xlane.f32.xlu0 %v128
  %v130 = vpop.xlane.xlu0 %129
  %v131 = vsel %vm30, %v113, 0.0
  %132 = vadd.xlane.f32.xlu0 %v131
  %v133 = vpop.xlane.xlu0 %132
  %v134 = vsel %vm30, %v114, 0.0
  %135 = vadd.xlane.f32.xlu0 %v134
  %v136 = vpop.xlane.xlu0 %135
  %v137 = vsel %vm30, %v115, 0.0
  %138 = vadd.xlane.f32.xlu0 %v137
  %v139 = vpop.xlane.xlu0 %138
  %v140 = vsel %vm30, %v116, 0.0
  %141 = vadd.xlane.f32.xlu0 %v140
  %v142 = vpop.xlane.xlu0 %141
  %v143 = vsel %vm30, %v117, 0.0
  %144 = vadd.xlane.f32.xlu0 %v143
  %v145 = vpop.xlane.xlu0 %144
  %v146 = vsel %vm30, %v118, 0.0
  %147 = vadd.xlane.f32.xlu0 %v146
  %v148 = vpop.xlane.xlu0 %147
  %v149 = vsel %vm30, %v119, 0.0
  %150 = vadd.xlane.f32.xlu0 %v149
  %v151 = vpop.xlane.xlu0 %150
  %v152 = vsel %vm30, %v120, 0.0
  %153 = vadd.xlane.f32.xlu0 %v152
  %v154 = vpop.xlane.xlu0 %153
  %v155 = vsel %vm30, %v121, 0.0
  %156 = vadd.xlane.f32.xlu0 %v155
  %v157 = vpop.xlane.xlu0 %156
  %v158 = vsel %vm30, %v122, 0.0
  %159 = vadd.xlane.f32.xlu0 %v158
  %v160 = vpop.xlane.xlu0 %159
  %v161 = vsel %vm30, %v123, 0.0
  %162 = vadd.xlane.f32.xlu0 %v161
  %v163 = vpop.xlane.xlu0 %162
  %v164 = vsel %vm30, %v124, 0.0
  %165 = vadd.xlane.f32.xlu0 %v164
  %v166 = vpop.xlane.xlu0 %165
  %v167 = vsel %vm30, %v125, 0.0
  %168 = vadd.xlane.f32.xlu0 %v167
  %v169 = vpop.xlane.xlu0 %168
  %v170 = vsel %vm30, %v126, 0.0
  %171 = vadd.xlane.f32.xlu0 %v170
  %v172 = vpop.xlane.xlu0 %171
  %v173 = vsel %vm30, %v127, 0.0
  %174 = vadd.xlane.f32.xlu0 %v173
  %v175 = vpop.xlane.xlu0 %174
  %v176 = vmul.f32 %v130, %v79
  %v177 = vmul.f32 %v133, %v79
  %v178 = vmul.f32 %v136, %v79
  %v179 = vmul.f32 %v139, %v79
  %v180 = vmul.f32 %v142, %v79
  %v181 = vmul.f32 %v145, %v79
  %v182 = vmul.f32 %v148, %v79
  %v183 = vmul.f32 %v151, %v79
  %v184 = vmul.f32 %v154, %v79
  %v185 = vmul.f32 %v157, %v79
  %v186 = vmul.f32 %v160, %v79
  %v187 = vmul.f32 %v163, %v79
  %v188 = vmul.f32 %v166, %v79
  %v189 = vmul.f32 %v169, %v79
  %v190 = vmul.f32 %v172, %v79
  %v191 = vmul.f32 %v175, %v79
  %v192 = vadd.f32 %v176, 1e-05
  %v193 = vadd.f32 %v177, 1e-05
  %v194 = vadd.f32 %v178, 1e-05
  %v195 = vadd.f32 %v179, 1e-05
  %v196 = vadd.f32 %v180, 1e-05
  %v197 = vadd.f32 %v181, 1e-05
  %v198 = vadd.f32 %v182, 1e-05
  %v199 = vadd.f32 %v183, 1e-05
  %v200 = vadd.f32 %v184, 1e-05
  %v201 = vadd.f32 %v185, 1e-05
  %v202 = vadd.f32 %v186, 1e-05
  %v203 = vadd.f32 %v187, 1e-05
  %v204 = vadd.f32 %v188, 1e-05
  %v205 = vadd.f32 %v189, 1e-05
  %v206 = vadd.f32 %v190, 1e-05
  %v207 = vadd.f32 %v191, 1e-05
  %v208 = vrsqrt.pop %v192
  %v209 = vrsqrt.pop %v193
  %v210 = vrsqrt.pop %v194
  %v211 = vrsqrt.pop %v195
  %v212 = vrsqrt.pop %v196
  %v213 = vrsqrt.pop %v197
  %v214 = vrsqrt.pop %v198
  %v215 = vrsqrt.pop %v199
  %v216 = vrsqrt.pop %v200
  %v217 = vrsqrt.pop %v201
  %v218 = vrsqrt.pop %v202
  %v219 = vrsqrt.pop %v203
  %v220 = vrsqrt.pop %v204
  %v221 = vrsqrt.pop %v205
  %v222 = vrsqrt.pop %v206
  %v223 = vrsqrt.pop %v207
  %v224 = vmul.f32 %v96, %v208
  %v225 = vmul.f32 %v97, %v209
  %v226 = vmul.f32 %v98, %v210
  %v227 = vmul.f32 %v99, %v211
  %v228 = vmul.f32 %v100, %v212
  %v229 = vmul.f32 %v101, %v213
  %v230 = vmul.f32 %v102, %v214
  %v231 = vmul.f32 %v103, %v215
  %v232 = vmul.f32 %v104, %v216
  %v233 = vmul.f32 %v105, %v217
  %v234 = vmul.f32 %v106, %v218
  %v235 = vmul.f32 %v107, %v219
  %v236 = vmul.f32 %v108, %v220
  %v237 = vmul.f32 %v109, %v221
  %v238 = vmul.f32 %v110, %v222
  %v239 = vmul.f32 %v111, %v223
  %v240 = vld [vmem:[%s1] sm:$0x1]
  %v242 = vlaneseq
  %v243 = vshrl.u32 %v242, 7
  %v244 = vsub.s32 0, %v243
  %v245 = vrot.slane %v240, %v244
  %v247 = vmul.f32 %v224, %v245
  %v248 = vmul.f32 %v225, %v245
  %v249 = vmul.f32 %v226, %v245
  %v250 = vmul.f32 %v227, %v245
  %v251 = vmul.f32 %v228, %v245
  %v252 = vmul.f32 %v229, %v245
  %v253 = vmul.f32 %v230, %v245
  %v254 = vmul.f32 %v231, %v245
  %v255 = vmul.f32 %v232, %v245
  %v256 = vmul.f32 %v233, %v245
  %v257 = vmul.f32 %v234, %v245
  %v258 = vmul.f32 %v235, %v245
  %v259 = vmul.f32 %v236, %v245
  %v260 = vmul.f32 %v237, %v245
  %v261 = vmul.f32 %v238, %v245
  %v262 = vmul.f32 %v239, %v245
  %v263 = vld [vmem:[%s2] sm:$0x1]
  %v265 = vlaneseq
  %v266 = vshrl.u32 %v265, 7
  %v267 = vsub.s32 0, %v266
  %v268 = vrot.slane %v263, %v267
  %v270 = vadd.f32 %v247, %v268
  %v271 = vadd.f32 %v248, %v268
  %v272 = vadd.f32 %v249, %v268
  %v273 = vadd.f32 %v250, %v268
  %v274 = vadd.f32 %v251, %v268
  %v275 = vadd.f32 %v252, %v268
  %v276 = vadd.f32 %v253, %v268
  %v277 = vadd.f32 %v254, %v268
  %v278 = vadd.f32 %v255, %v268
  %v279 = vadd.f32 %v256, %v268
  %v280 = vadd.f32 %v257, %v268
  %v281 = vadd.f32 %v258, %v268
  %v282 = vadd.f32 %v259, %v268
  %v283 = vadd.f32 %v260, %v268
  %v284 = vadd.f32 %v261, %v268
  %v285 = vadd.f32 %v262, %v268
  %286 = vst.msk [vmem:[%s3] sm:$0xff] %vm30, %v270
  %287 = vst.msk [vmem:[%s3 + $0x8] sm:$0xff] %vm30, %v271
  %288 = vst.msk [vmem:[%s3 + $0x10] sm:$0xff] %vm30, %v272
  %289 = vst.msk [vmem:[%s3 + $0x18] sm:$0xff] %vm30, %v273
  %290 = vst.msk [vmem:[%s3 + $0x20] sm:$0xff] %vm30, %v274
  %291 = vst.msk [vmem:[%s3 + $0x28] sm:$0xff] %vm30, %v275
  %292 = vst.msk [vmem:[%s3 + $0x30] sm:$0xff] %vm30, %v276
  %293 = vst.msk [vmem:[%s3 + $0x38] sm:$0xff] %vm30, %v277
  %294 = vst.msk [vmem:[%s3 + $0x40] sm:$0xff] %vm30, %v278
  %295 = vst.msk [vmem:[%s3 + $0x48] sm:$0xff] %vm30, %v279
  %296 = vst.msk [vmem:[%s3 + $0x50] sm:$0xff] %vm30, %v280
  %297 = vst.msk [vmem:[%s3 + $0x58] sm:$0xff] %vm30, %v281
  %298 = vst.msk [vmem:[%s3 + $0x60] sm:$0xff] %vm30, %v282
  %299 = vst.msk [vmem:[%s3 + $0x68] sm:$0xff] %vm30, %v283
  %300 = vst.msk [vmem:[%s3 + $0x70] sm:$0xff] %vm30, %v284
  %301 = vst.msk [vmem:[%s3 + $0x78] sm:$0xff] %vm30, %v285
  // Predicated region
  $region14: #{tpu_custom_call.1} parent=0 // pred_check
    _
  $region15: #{tpu_custom_call.1} parent=0 // pred_check_branch
    %303 = sbr.rel (0) target = $region17
  $region16: #{tpu_custom_call.1} parent=0 // pred_region
    _
  $region17: #{tpu_custom_call.1} parent=0 // pred_fallthru
    _
  // Predicated region
  $region18: #{tpu_custom_call.1} parent=0 // pred_check
    _
  $region19: #{tpu_custom_call.1} parent=0 // pred_check_branch
    %305 = sbr.rel (0) target = $region21
  $region20: #{tpu_custom_call.1} parent=0 // pred_region
    _
  $region21: #{tpu_custom_call.1} parent=0 // pred_fallthru
    _

</llo_original>
